<compile_context>
chip_gen: v7x
topology: tpu7x:2x2x1
jax: 0.10.0
libtpu: 0.0.40
codegen_flags: <defaults>
</compile_context>

<pallas_src>
import jax
import jax.numpy as jnp
from jax import lax
from jax.experimental import pallas as pl
from jax.experimental.pallas import tpu as pltpu

EPS = 1e-5  # PyTorch nn.LayerNorm default


def prenorm_kernel(x_ref, a_ref, w_ref, bias_ref, o_ref):
    """x_ref: (TM, L) tile of the lane-packed (M/P, L=P*D) input.

    a_ref:    (L, L) block-diagonal ones/D matrix (per-group mean broadcast).
    w_ref:    (L, L) block-diagonal, gamma-fused linear weight.
    bias_ref: (1, L) beta-fused bias, tiled over the P lane groups.
    """
    x = x_ref[...].astype(jnp.float32)
    a = a_ref[...]

    # --- LayerNorm over each D-lane group (f32 math) ---
    mean = jnp.dot(x, a, preferred_element_type=jnp.float32)       # group mean per lane
    xc = x - mean
    var = jnp.dot(xc * xc, a, preferred_element_type=jnp.float32)  # biased variance
    xn = xc * lax.rsqrt(var + EPS)

    # --- fn: Linear(D -> D); gamma folded into W, beta folded into bias ---
    y = jnp.dot(xn.astype(w_ref.dtype), w_ref[...],
                preferred_element_type=jnp.float32)
    o_ref[...] = (y + bias_ref[...].astype(jnp.float32)).astype(o_ref.dtype)


def _pack_factor(M, D):
    """Rows folded into the lane axis: largest p with p*D dividing 128 and p | M."""
    if D >= 128 or 128 % D != 0:
        return 1
    p = 128 // D                      # power of two
    while p > 1 and M % p != 0:
        p //= 2
    return p


def _choose_tm(Mp, L, itemsize, tm_hint):
    """Packed-row tile: multiple of 8 (or == Mp when Mp < 8), ~4 MiB/buffer
    VMEM budget, and capped so the parallel grid keeps >= ~4 steps (v7x)."""
    bytes_per_row = L * max(itemsize, 4)                       # f32 copy worst case
    cap = max(8, (((4 << 20) // bytes_per_row) // 8) * 8)      # ~4 MiB per pipeline buffer
    tm = min(tm_hint, cap, max(1, -(-Mp // 4)))                # >= ~4 grid steps when Mp large
    tm = max(8, (tm // 8) * 8)
    return Mp if Mp < tm else tm


def prenorm(x, gamma, beta, w, b, *, tm_hint=8192):
    """x: (B, S, D) -> (B, S, D). LayerNorm(D) then Linear(D, D)."""
    B, S, D = x.shape
    M = B * S
    P = _pack_factor(M, D)
    L = P * D
    Mp = M // P
    x2 = x.reshape(Mp, L)                 # free contiguous reshape, no copy / no pad

    f32 = jnp.float32
    # Fold gamma into the weight and beta into the bias (once, on the host):
    #   ((xn*g + beta) @ W + b) == xn @ (g[:,None]*W) + (beta @ W + b)
    w_fused = gamma.reshape(D, 1).astype(f32) * w.astype(f32)          # (D, D)
    bias_fused = beta.astype(f32) @ w.astype(f32) + b.astype(f32)      # (1, D)

    # Lane-packed, block-diagonal parameters.
    eye_p = jnp.eye(P, dtype=f32)
    a_bd = jnp.kron(eye_p, jnp.full((D, D), 1.0 / D, dtype=f32))       # (L, L)
    w_bd = jnp.kron(eye_p, w_fused).astype(w.dtype)                    # (L, L)
    bias_bd = jnp.tile(bias_fused, (1, P))                             # (1, L)

    itemsize_x = jnp.dtype(x.dtype).itemsize
    tm = _choose_tm(Mp, L, itemsize_x, tm_hint)
    n_tiles = pl.cdiv(Mp, tm)

    # Explicit scoped-VMEM budget: double-buffered x/out tiles + resident params
    # (+ headroom). Covers v5e's 16 MiB default and stays <= 48 MiB for v7x.
    pipe_bytes = 4 * tm * L * itemsize_x
    resident_bytes = ((a_bd.size + bias_bd.size) * 4
                      + w_bd.size * jnp.dtype(w_bd.dtype).itemsize)
    vmem_limit = int(min(max(pipe_bytes + resident_bytes + (8 << 20), 16 << 20),
                         48 << 20))

    cost = pl.CostEstimate(
        flops=3 * 2 * Mp * L * L,                  # mean, var, linear matmuls
        transcendentals=Mp * L,                    # rsqrt evaluations
        bytes_accessed=(2 * M * D * itemsize_x
                        + (a_bd.size + bias_bd.size) * 4
                        + w_bd.size * jnp.dtype(w_bd.dtype).itemsize),
    )

    out2 = pl.pallas_call(
        prenorm_kernel,
        out_shape=jax.ShapeDtypeStruct((Mp, L), x.dtype),
        grid_spec=pltpu.PrefetchScalarGridSpec(
            num_scalar_prefetch=0,
            grid=(n_tiles,),
            in_specs=[
                pl.BlockSpec((tm, L), lambda i: (i, 0)),   # x slab (pipelined)
                pl.BlockSpec((L, L), lambda i: (0, 0)),    # group-mean matrix (resident)
                pl.BlockSpec((L, L), lambda i: (0, 0)),    # block-diag weight (resident)
                pl.BlockSpec((1, L), lambda i: (0, 0)),    # fused bias (resident)
            ],
            out_specs=pl.BlockSpec((tm, L), lambda i: (i, 0)),
        ),
        compiler_params=pltpu.CompilerParams(
            dimension_semantics=("parallel",),
            vmem_limit_bytes=vmem_limit),
        cost_estimate=cost,
    )(x2, a_bd, w_bd, bias_bd)

    return out2.reshape(B, S, D)


def prenorm_ref(x, gamma, beta, w, b):
    x32 = x.astype(jnp.float32)
    mean = jnp.mean(x32, axis=-1, keepdims=True)
    var = jnp.mean((x32 - mean) ** 2, axis=-1, keepdims=True)
    xn = (x32 - mean) * lax.rsqrt(var + EPS)
    xn = xn * gamma[0] + beta[0]
    return (xn @ w.astype(jnp.float32) + b[0]).astype(x.dtype)


if __name__ == "__main__":
    key = jax.random.PRNGKey(0)
    kx, kg, kbe, kw, kb, kx2, kx3 = jax.random.split(key, 7)

    # Shapes implied by PreNorm over a (B, S, D) transformer activation.
    B, S, D = 2, 8, 32
    x = jax.random.normal(kx, (B, S, D), dtype=jnp.float32)

    # LayerNorm params (non-trivial, so the gamma/beta folds are exercised)
    # and the wrapped fn = Linear(D, D).
    gamma = (1.0 + 0.1 * jax.random.normal(kg, (1, D))).astype(jnp.float32)
    beta = (0.1 * jax.random.normal(kbe, (1, D))).astype(jnp.float32)
    w = (0.02 * jax.random.normal(kw, (D, D))).astype(jnp.float32)
    b = (0.01 * jax.random.normal(kb, (1, D))).astype(jnp.float32)

    # 1) Lane-packed path (P=4 -> (4, 128) slab, single block).
    out = prenorm(x, gamma, beta, w, b)
    jax.block_until_ready(out)
    ref = prenorm_ref(x, gamma, beta, w, b)
    assert out.shape == (B, S, D)
    assert jnp.allclose(out, ref, atol=2e-4, rtol=2e-4), "mismatch (packed path)"

    # 2) Lane-packed, multi-step pipelined grid (P=4, Mp=32, grid=(4,)).
    B3, S3 = 4, 32
    x3 = jax.random.normal(kx3, (B3, S3, D), dtype=jnp.float32)
    out3 = prenorm(x3, gamma, beta, w, b, tm_hint=8)
    jax.block_until_ready(out3)
    ref3 = prenorm_ref(x3, gamma, beta, w, b)
    assert out3.shape == (B3, S3, D)
    assert jnp.allclose(out3, ref3, atol=2e-4, rtol=2e-4), "mismatch (packed+tiled)"

    # 3) Non-divisible row count: P falls back to 1, partial last block, no pad.
    B2, S2 = 3, 7
    x2 = jax.random.normal(kx2, (B2, S2, D), dtype=jnp.float32)
    out2 = prenorm(x2, gamma, beta, w, b, tm_hint=8)   # grid=(3,), masked tail
    jax.block_until_ready(out2)
    ref2 = prenorm_ref(x2, gamma, beta, w, b)
    assert out2.shape == (B2, S2, D)
    assert jnp.allclose(out2, ref2, atol=2e-4, rtol=2e-4), "mismatch (partial block)"

    print("KERNEL_OK")
</pallas_src>

<mosaic_0001>
module attributes {stable_mosaic.version = 11 : i64} {
  func.func @prenorm_kernel(%arg0: i32, %arg1: memref<4x128xf32, #tpu.memory_space<vmem>>, %arg2: memref<128x128xf32, #tpu.memory_space<vmem>>, %arg3: memref<128x128xf32, #tpu.memory_space<vmem>>, %arg4: memref<1x128xf32, #tpu.memory_space<vmem>>, %arg5: memref<4x128xf32, #tpu.memory_space<vmem>>) attributes {dimension_semantics = [#tpu.dimension_semantics<parallel>], iteration_bounds = array<i64: 1>, scalar_prefetch = 0 : i64, scratch_operands = 0 : i64, tpu.core_type = #tpu.core_type<tc>, window_params = [{transform_indices = @transform_0, window_bounds = array<i64: 4, 128>}, {pipeline_mode = #tpu.pipeline_mode<synchronous>, transform_indices = @transform_1, window_bounds = array<i64: 128, 128>}, {pipeline_mode = #tpu.pipeline_mode<synchronous>, transform_indices = @transform_2, window_bounds = array<i64: 128, 128>}, {pipeline_mode = #tpu.pipeline_mode<synchronous>, transform_indices = @transform_3, window_bounds = array<i64: 1, 128>}, {transform_indices = @transform_4, window_bounds = array<i64: 4, 128>}]} {
    %c0 = arith.constant 0 : index
    %c0_0 = arith.constant 0 : index
    %0 = vector.load %arg1[%c0, %c0_0] : memref<4x128xf32, #tpu.memory_space<vmem>>, vector<4x128xf32>
    %c0_1 = arith.constant 0 : index
    %c0_2 = arith.constant 0 : index
    %1 = vector.load %arg2[%c0_1, %c0_2] : memref<128x128xf32, #tpu.memory_space<vmem>>, vector<128x128xf32>
    %cst = arith.constant dense<0.000000e+00> : vector<4x128xf32>
    %2 = tpu.matmul %0, %1, %cst {dimension_numbers = #tpu.dot_dimension_numbers<[1], [0], [0], [1], [0, 0, 1, 1], [], []>} : vector<4x128xf32>, vector<128x128xf32>, vector<4x128xf32> -> vector<4x128xf32>
    %3 = arith.subf %0, %2 : vector<4x128xf32>
    %4 = arith.mulf %3, %3 : vector<4x128xf32>
    %cst_3 = arith.constant dense<0.000000e+00> : vector<4x128xf32>
    %5 = tpu.matmul %4, %1, %cst_3 {dimension_numbers = #tpu.dot_dimension_numbers<[1], [0], [0], [1], [0, 0, 1, 1], [], []>} : vector<4x128xf32>, vector<128x128xf32>, vector<4x128xf32> -> vector<4x128xf32>
    %cst_4 = arith.constant 9.99999974E-6 : f32
    %6 = vector.broadcast %cst_4 : f32 to vector<4x128xf32>
    %7 = arith.addf %5, %6 : vector<4x128xf32>
    %8 = math.rsqrt %7 : vector<4x128xf32>
    %9 = arith.mulf %3, %8 : vector<4x128xf32>
    %c0_5 = arith.constant 0 : index
    %c0_6 = arith.constant 0 : index
    %10 = vector.load %arg3[%c0_5, %c0_6] : memref<128x128xf32, #tpu.memory_space<vmem>>, vector<128x128xf32>
    %cst_7 = arith.constant dense<0.000000e+00> : vector<4x128xf32>
    %11 = tpu.matmul %9, %10, %cst_7 {dimension_numbers = #tpu.dot_dimension_numbers<[1], [0], [0], [1], [0, 0, 1, 1], [], []>} : vector<4x128xf32>, vector<128x128xf32>, vector<4x128xf32> -> vector<4x128xf32>
    %c0_8 = arith.constant 0 : index
    %c0_9 = arith.constant 0 : index
    %12 = vector.load %arg4[%c0_8, %c0_9] : memref<1x128xf32, #tpu.memory_space<vmem>>, vector<1x128xf32>
    %13 = vector.broadcast %12 : vector<1x128xf32> to vector<4x128xf32>
    %14 = arith.addf %11, %13 : vector<4x128xf32>
    %c0_10 = arith.constant 0 : index
    %c0_11 = arith.constant 0 : index
    %15 = vector.load %arg5[%c0_10, %c0_11] : memref<4x128xf32, #tpu.memory_space<vmem>>, vector<4x128xf32>
    tpu.vector_store %arg5[%c0_10, %c0_11], %14 {strides = array<i32>} : memref<4x128xf32, #tpu.memory_space<vmem>>, vector<4x128xf32>,
    return
  }
  func.func @transform_0(%arg0: i32) -> (i32, i32) {
    %c0_i32 = arith.constant 0 : i32
    %c0_i32_0 = arith.constant 0 : i32
    return %arg0, %c0_i32 : i32, i32
  }
  func.func @transform_1(%arg0: i32) -> (i32, i32) {
    %c0_i32 = arith.constant 0 : i32
    %c0_i32_0 = arith.constant 0 : i32
    %c0_i32_1 = arith.constant 0 : i32
    return %c0_i32, %c0_i32_0 : i32, i32
  }
  func.func @transform_2(%arg0: i32) -> (i32, i32) {
    %c0_i32 = arith.constant 0 : i32
    %c0_i32_0 = arith.constant 0 : i32
    %c0_i32_1 = arith.constant 0 : i32
    return %c0_i32, %c0_i32_0 : i32, i32
  }
  func.func @transform_3(%arg0: i32) -> (i32, i32) {
    %c0_i32 = arith.constant 0 : i32
    %c0_i32_0 = arith.constant 0 : i32
    %c0_i32_1 = arith.constant 0 : i32
    return %c0_i32, %c0_i32_0 : i32, i32
  }
  func.func @transform_4(%arg0: i32) -> (i32, i32) {
    %c0_i32 = arith.constant 0 : i32
    %c0_i32_0 = arith.constant 0 : i32
    return %arg0, %c0_i32 : i32, i32
  }
}

</mosaic_0001>

<llo_original>
// kernel: tpu_custom_call.1
$region0: #{tpu_custom_call.1}
  #allocation0 [shape = 'u32[]', space=smem, size = 0x4, offset = 0x4, fixed_abs, tag = 'smem constant byte address 0x4 - core index']
  #allocation1 [shape = 'u32[144,128]{1,0:T(1,128)}', space=vmem, size = 0x12000, scoped, tag = 'internal scratch']
  %s0 = inlined_call_operand.hbm [shape: f32[4,128], index: 0, kind: input, shape index: {}]
  %s1 = inlined_call_operand.hbm [shape: f32[128,128], index: 1, kind: input, shape index: {}]
  %s2 = inlined_call_operand.hbm [shape: f32[128,128], index: 2, kind: input, shape index: {}]
  %s3 = inlined_call_operand.vmem [shape: f32[1,128], index: 3, kind: input, shape index: {}]
  %s4 = inlined_call_operand.hbm [shape: f32[4,128], index: 4, kind: output, shape index: {}]
  %s5 = sld [smem:[#allocation0]]
  $region38: #{tpu_custom_call.1} parent=0
    _
  %s7 = ssub.s32 1, %s5
  %s8 = scalar_select 0, %s7, %s5
  $region1: #{tpu_custom_call.1} parent=0
    #allocation2 [shape = 'u8[2048]{0}', space=vmem, size = 0x800, scoped, tag = 'input window, operand 0, single buffered']
    #allocation3 [shape = 's32[1]{0}', space=sflag, size = 0x4, scoped, tag = 'scoped memory for tpu_custom_call.1']
    #allocation4 [shape = 's32[1]{0}', space=sflag, size = 0x4, scoped, tag = 'scoped memory for tpu_custom_call.1']
    #allocation5 [shape = 'u8[65536]{0}', space=vmem, size = 0x10000, scoped, tag = 'input window, operand 1, single buffered']
    #allocation6 [shape = 's32[1]{0}', space=sflag, size = 0x4, scoped, tag = 'scoped memory for tpu_custom_call.1']
    #allocation7 [shape = 'u8[65536]{0}', space=vmem, size = 0x10000, scoped, tag = 'input window, operand 2, single buffered']
    #allocation8 [shape = 'u8[2048]{0}', space=vmem, size = 0x800, scoped, tag = 'output window, operand 0, single buffered']
    %9 = vsyncpa [#allocation3], 0
    %10 = vsyncpa [#allocation6], 0
    %11 = vsyncpa [#allocation4], 0
    // Predicated region
    $region2: #{tpu_custom_call.1} parent=1 // pred_check
      _
    $region3: #{tpu_custom_call.1} parent=1 // pred_check_branch
      %13 = sbr.rel (0) target = $region5
    $region4: #{tpu_custom_call.1} parent=1 // pred_region
      %s15 = ssub.s32 64, 64
      %16 = vsyncadd [#allocation3], %s15
      %s18 = sshll.u32 [#allocation2], 4
      %s19 = int_to_ptr.vmem [resolvable:$true] %s18
      %21 = dma.hbm_to_vmem [thread:$0]  %s0, 64, %s19, [#allocation3]
    $region5: #{tpu_custom_call.1} parent=1 // pred_fallthru
      _
    // Predicated region
    $region6: #{tpu_custom_call.1} parent=1 // pred_check
      _
    $region7: #{tpu_custom_call.1} parent=1 // pred_check_branch
      %23 = sbr.rel (0) target = $region9
    $region8: #{tpu_custom_call.1} parent=1 // pred_region
      %s25 = ssub.s32 2048, 2048
      %26 = vsyncadd [#allocation6], %s25
      %s27 = sshll.u32 [#allocation5], 4
      %s28 = int_to_ptr.vmem [resolvable:$true] %s27
      %33 = dma.hbm_to_vmem [thread:$0]  %s1, 2048, %s28, [#allocation6], 128, 128, 8
    $region9: #{tpu_custom_call.1} parent=1 // pred_fallthru
      _
    // Predicated region
    $region10: #{tpu_custom_call.1} parent=1 // pred_check
      _
    $region11: #{tpu_custom_call.1} parent=1 // pred_check_branch
      %35 = sbr.rel (0) target = $region13
    $region12: #{tpu_custom_call.1} parent=1 // pred_region
      %s37 = ssub.s32 2048, 2048
      %38 = vsyncadd [#allocation6], %s37
      %s39 = sshll.u32 [#allocation7], 4
      %s40 = int_to_ptr.vmem [resolvable:$true] %s39
      %45 = dma.hbm_to_vmem [thread:$0]  %s2, 2048, %s40, [#allocation6], 128, 128, 8
    $region13: #{tpu_custom_call.1} parent=1 // pred_fallthru
      _
    // Predicated region
    $region14: #{tpu_custom_call.1} parent=1 // pred_check
      _
    $region15: #{tpu_custom_call.1} parent=1 // pred_check_branch
      %47 = sbr.rel (0) target = $region17
    $region16: #{tpu_custom_call.1} parent=1 // pred_region
      _
    $region17: #{tpu_custom_call.1} parent=1 // pred_fallthru
      _
    // Predicated region
    $region18: #{tpu_custom_call.1} parent=1 // pred_check
      _
    $region19: #{tpu_custom_call.1} parent=1 // pred_check_branch
      %49 = sbr.rel (0) target = $region21
    $region20: #{tpu_custom_call.1} parent=1 // pred_region
      %50 = dma.done [#allocation3], 64
    $region21: #{tpu_custom_call.1} parent=1 // pred_fallthru
      _
    // Predicated region
    $region22: #{tpu_custom_call.1} parent=1 // pred_check
      _
    $region23: #{tpu_custom_call.1} parent=1 // pred_check_branch
      %52 = sbr.rel (0) target = $region25
    $region24: #{tpu_custom_call.1} parent=1 // pred_region
      %53 = dma.done [#allocation6], 2048
    $region25: #{tpu_custom_call.1} parent=1 // pred_fallthru
      _
    // Predicated region
    $region26: #{tpu_custom_call.1} parent=1 // pred_check
      _
    $region27: #{tpu_custom_call.1} parent=1 // pred_check_branch
      %55 = sbr.rel (0) target = $region29
    $region28: #{tpu_custom_call.1} parent=1 // pred_region
      %56 = dma.done [#allocation6], 2048
    $region29: #{tpu_custom_call.1} parent=1 // pred_fallthru
      _
    %v57 = vld [vmem:[#allocation2] sm:$0xf]
    %v58 = vld [vmem:[#allocation5] sm:$0xff]
    %v59 = vld [vmem:[#allocation5 + $0x8] sm:$0xff]
    %v60 = vld [vmem:[#allocation5 + $0x10] sm:$0xff]
    %v61 = vld [vmem:[#allocation5 + $0x18] sm:$0xff]
    %v62 = vld [vmem:[#allocation5 + $0x20] sm:$0xff]
    %v63 = vld [vmem:[#allocation5 + $0x28] sm:$0xff]
    %v64 = vld [vmem:[#allocation5 + $0x30] sm:$0xff]
    %v65 = vld [vmem:[#allocation5 + $0x38] sm:$0xff]
    %v66 = vld [vmem:[#allocation5 + $0x40] sm:$0xff]
    %v67 = vld [vmem:[#allocation5 + $0x48] sm:$0xff]
    %v68 = vld [vmem:[#allocation5 + $0x50] sm:$0xff]
    %v69 = vld [vmem:[#allocation5 + $0x58] sm:$0xff]
    %v70 = vld [vmem:[#allocation5 + $0x60] sm:$0xff]
    %v71 = vld [vmem:[#allocation5 + $0x68] sm:$0xff]
    %v72 = vld [vmem:[#allocation5 + $0x70] sm:$0xff]
    %v73 = vld [vmem:[#allocation5 + $0x78] sm:$0xff]
    %74 = vmatprep.subr.mxu0 0.0
    %75 = vmatpush1.msra.mxu0 %v58
    %76 = vmatprep.subr.mxu0 0.0
    %77 = vmatpush1.msra.mxu0 %v59
    %78 = vmatprep.subr.mxu0 0.0
    %79 = vmatpush1.msra.mxu0 %v60
    %80 = vmatprep.subr.mxu0 0.0
    %81 = vmatpush1.msra.mxu0 %v61
    %82 = vmatprep.subr.mxu0 0.0
    %83 = vmatpush1.msra.mxu0 %v62
    %84 = vmatprep.subr.mxu0 0.0
    %85 = vmatpush1.msra.mxu0 %v63
    %86 = vmatprep.subr.mxu0 0.0
    %87 = vmatpush1.msra.mxu0 %v64
    %88 = vmatprep.subr.mxu0 0.0
    %89 = vmatpush1.msra.mxu0 %v65
    %90 = vmatprep.subr.mxu0 0.0
    %91 = vmatpush1.msra.mxu0 %v66
    %92 = vmatprep.subr.mxu0 0.0
    %93 = vmatpush1.msra.mxu0 %v67
    %94 = vmatprep.subr.mxu0 0.0
    %95 = vmatpush1.msra.mxu0 %v68
    %96 = vmatprep.subr.mxu0 0.0
    %97 = vmatpush1.msra.mxu0 %v69
    %98 = vmatprep.subr.mxu0 0.0
    %99 = vmatpush1.msra.mxu0 %v70
    %100 = vmatprep.subr.mxu0 0.0
    %101 = vmatpush1.msra.mxu0 %v71
    %102 = vmatprep.subr.mxu0 0.0
    %103 = vmatpush1.msra.mxu0 %v72
    %104 = vmatprep.subr.mxu0 0.0
    %105 = vmatpush1.msra.mxu0 %v73
    %106 = vmatprep.subr.mxu0 0.0
    %107 = vmatpush1.msra.mxu0 0.0
    %108 = vmatprep.subr.mxu0 0.0
    %109 = vmatpush1.msra.mxu0 0.0
    %110 = vmatprep.subr.mxu0 0.0
    %111 = vmatpush1.msra.mxu0 0.0
    %112 = vmatprep.subr.mxu0 0.0
    %113 = vmatpush1.msra.mxu0 0.0
    %114 = vmatprep.subr.mxu0 0.0
    %115 = vmatpush1.msra.mxu0 0.0
    %116 = vmatprep.subr.mxu0 0.0
    %117 = vmatpush1.msra.mxu0 0.0
    %118 = vmatprep.subr.mxu0 0.0
    %119 = vmatpush1.msra.mxu0 0.0
    %120 = vmatprep.subr.mxu0 0.0
    %121 = vmatpush1.msra.mxu0 0.0
    %122 = vmatprep.subr.mxu0 0.0
    %123 = vmatpush1.msra.mxu0 0.0
    %124 = vmatprep.subr.mxu0 0.0
    %125 = vmatpush1.msra.mxu0 0.0
    %126 = vmatprep.subr.mxu0 0.0
    %127 = vmatpush1.msra.mxu0 0.0
    %128 = vmatprep.subr.mxu0 0.0
    %129 = vmatpush1.msra.mxu0 0.0
    %130 = vmatprep.subr.mxu0 0.0
    %131 = vmatpush1.msra.mxu0 0.0
    %132 = vmatprep.subr.mxu0 0.0
    %133 = vmatpush1.msra.mxu0 0.0
    %134 = vmatprep.subr.mxu0 0.0
    %135 = vmatpush1.msra.mxu0 0.0
    %136 = vmatprep.subr.mxu0 0.0
    %137 = vmatpush1.msra.mxu0 0.0
    %138 = vmatprep.mubr.f32.mxu0 0.0
    %139 = vmatmul.mubr.f32.gmra.mrb[0].mxu0 %v57
    %v140 = vpop.f32.mrb[0].mxu0
    %v141 = vadd.f32 0.0, %v140
    %v142 = vpop.f32.mrb[0].mxu0
    %143 = vdwg.mxu0
    %v144 = vsub.f32 %v57, %v141
    %v145 = vmul.f32 %v144, %v144
    %146 = vmatprep.subr.mxu0 0.0
    %147 = vmatpush1.msra.mxu0 %v58
    %148 = vmatprep.subr.mxu0 0.0
    %149 = vmatpush1.msra.mxu0 %v59
    %150 = vmatprep.subr.mxu0 0.0
    %151 = vmatpush1.msra.mxu0 %v60
    %152 = vmatprep.subr.mxu0 0.0
    %153 = vmatpush1.msra.mxu0 %v61
    %154 = vmatprep.subr.mxu0 0.0
    %155 = vmatpush1.msra.mxu0 %v62
    %156 = vmatprep.subr.mxu0 0.0
    %157 = vmatpush1.msra.mxu0 %v63
    %158 = vmatprep.subr.mxu0 0.0
    %159 = vmatpush1.msra.mxu0 %v64
    %160 = vmatprep.subr.mxu0 0.0
    %161 = vmatpush1.msra.mxu0 %v65
    %162 = vmatprep.subr.mxu0 0.0
    %163 = vmatpush1.msra.mxu0 %v66
    %164 = vmatprep.subr.mxu0 0.0
    %165 = vmatpush1.msra.mxu0 %v67
    %166 = vmatprep.subr.mxu0 0.0
    %167 = vmatpush1.msra.mxu0 %v68
    %168 = vmatprep.subr.mxu0 0.0
    %169 = vmatpush1.msra.mxu0 %v69
    %170 = vmatprep.subr.mxu0 0.0
    %171 = vmatpush1.msra.mxu0 %v70
    %172 = vmatprep.subr.mxu0 0.0
    %173 = vmatpush1.msra.mxu0 %v71
    %174 = vmatprep.subr.mxu0 0.0
    %175 = vmatpush1.msra.mxu0 %v72
    %176 = vmatprep.subr.mxu0 0.0
    %177 = vmatpush1.msra.mxu0 %v73
    %178 = vmatprep.subr.mxu0 0.0
    %179 = vmatpush1.msra.mxu0 0.0
    %180 = vmatprep.subr.mxu0 0.0
    %181 = vmatpush1.msra.mxu0 0.0
    %182 = vmatprep.subr.mxu0 0.0
    %183 = vmatpush1.msra.mxu0 0.0
    %184 = vmatprep.subr.mxu0 0.0
    %185 = vmatpush1.msra.mxu0 0.0
    %186 = vmatprep.subr.mxu0 0.0
    %187 = vmatpush1.msra.mxu0 0.0
    %188 = vmatprep.subr.mxu0 0.0
    %189 = vmatpush1.msra.mxu0 0.0
    %190 = vmatprep.subr.mxu0 0.0
    %191 = vmatpush1.msra.mxu0 0.0
    %192 = vmatprep.subr.mxu0 0.0
    %193 = vmatpush1.msra.mxu0 0.0
    %194 = vmatprep.subr.mxu0 0.0
    %195 = vmatpush1.msra.mxu0 0.0
    %196 = vmatprep.subr.mxu0 0.0
    %197 = vmatpush1.msra.mxu0 0.0
    %198 = vmatprep.subr.mxu0 0.0
    %199 = vmatpush1.msra.mxu0 0.0
    %200 = vmatprep.subr.mxu0 0.0
    %201 = vmatpush1.msra.mxu0 0.0
    %202 = vmatprep.subr.mxu0 0.0
    %203 = vmatpush1.msra.mxu0 0.0
    %204 = vmatprep.subr.mxu0 0.0
    %205 = vmatpush1.msra.mxu0 0.0
    %206 = vmatprep.subr.mxu0 0.0
    %207 = vmatpush1.msra.mxu0 0.0
    %208 = vmatprep.subr.mxu0 0.0
    %209 = vmatpush1.msra.mxu0 0.0
    %210 = vmatprep.mubr.f32.mxu0 0.0
    %211 = vmatmul.mubr.f32.gmra.mrb[0].mxu0 %v145
    %v212 = vpop.f32.mrb[0].mxu0
    %v213 = vadd.f32 1e-05, %v212
    %v214 = vpop.f32.mrb[0].mxu0
    %215 = vdwg.mxu0
    %v216 = vrsqrt.pop %v213
    %v217 = vmul.f32 %v144, %v216
    %v218 = vld [vmem:[#allocation7] sm:$0xff]
    %v219 = vld [vmem:[#allocation7 + $0x8] sm:$0xff]
    %v220 = vld [vmem:[#allocation7 + $0x10] sm:$0xff]
    %v221 = vld [vmem:[#allocation7 + $0x18] sm:$0xff]
    %v222 = vld [vmem:[#allocation7 + $0x20] sm:$0xff]
    %v223 = vld [vmem:[#allocation7 + $0x28] sm:$0xff]
    %v224 = vld [vmem:[#allocation7 + $0x30] sm:$0xff]
    %v225 = vld [vmem:[#allocation7 + $0x38] sm:$0xff]
    %v226 = vld [vmem:[#allocation7 + $0x40] sm:$0xff]
    %v227 = vld [vmem:[#allocation7 + $0x48] sm:$0xff]
    %v228 = vld [vmem:[#allocation7 + $0x50] sm:$0xff]
    %v229 = vld [vmem:[#allocation7 + $0x58] sm:$0xff]
    %v230 = vld [vmem:[#allocation7 + $0x60] sm:$0xff]
    %v231 = vld [vmem:[#allocation7 + $0x68] sm:$0xff]
    %v232 = vld [vmem:[#allocation7 + $0x70] sm:$0xff]
    %v233 = vld [vmem:[#allocation7 + $0x78] sm:$0xff]
    %v234 = vld [vmem:[%s3] sm:$0x1]
    %v236 = vlaneseq
    %v237 = vshrl.u32 %v236, 7
    %v238 = vsub.s32 0, %v237
    %v239 = vrot.slane %v234, %v238
    %241 = vmatprep.subr.mxu0 0.0
    %242 = vmatpush1.msra.mxu0 %v218
    %243 = vmatprep.subr.mxu0 0.0
    %244 = vmatpush1.msra.mxu0 %v219
    %245 = vmatprep.subr.mxu0 0.0
    %246 = vmatpush1.msra.mxu0 %v220
    %247 = vmatprep.subr.mxu0 0.0
    %248 = vmatpush1.msra.mxu0 %v221
    %249 = vmatprep.subr.mxu0 0.0
    %250 = vmatpush1.msra.mxu0 %v222
    %251 = vmatprep.subr.mxu0 0.0
    %252 = vmatpush1.msra.mxu0 %v223
    %253 = vmatprep.subr.mxu0 0.0
    %254 = vmatpush1.msra.mxu0 %v224
    %255 = vmatprep.subr.mxu0 0.0
    %256 = vmatpush1.msra.mxu0 %v225
    %257 = vmatprep.subr.mxu0 0.0
    %258 = vmatpush1.msra.mxu0 %v226
    %259 = vmatprep.subr.mxu0 0.0
    %260 = vmatpush1.msra.mxu0 %v227
    %261 = vmatprep.subr.mxu0 0.0
    %262 = vmatpush1.msra.mxu0 %v228
    %263 = vmatprep.subr.mxu0 0.0
    %264 = vmatpush1.msra.mxu0 %v229
    %265 = vmatprep.subr.mxu0 0.0
    %266 = vmatpush1.msra.mxu0 %v230
    %267 = vmatprep.subr.mxu0 0.0
    %268 = vmatpush1.msra.mxu0 %v231
    %269 = vmatprep.subr.mxu0 0.0
    %270 = vmatpush1.msra.mxu0 %v232
    %271 = vmatprep.subr.mxu0 0.0
    %272 = vmatpush1.msra.mxu0 %v233
    %273 = vmatprep.subr.mxu0 0.0
    %274 = vmatpush1.msra.mxu0 0.0
    %275 = vmatprep.subr.mxu0 0.0
    %276 = vmatpush1.msra.mxu0 0.0
    %277 = vmatprep.subr.mxu0 0.0
    %278 = vmatpush1.msra.mxu0 0.0
    %279 = vmatprep.subr.mxu0 0.0
    %280 = vmatpush1.msra.mxu0 0.0
    %281 = vmatprep.subr.mxu0 0.0
    %282 = vmatpush1.msra.mxu0 0.0
    %283 = vmatprep.subr.mxu0 0.0
    %284 = vmatpush1.msra.mxu0 0.0
    %285 = vmatprep.subr.mxu0 0.0
    %286 = vmatpush1.msra.mxu0 0.0
    %287 = vmatprep.subr.mxu0 0.0
    %288 = vmatpush1.msra.mxu0 0.0
    %289 = vmatprep.subr.mxu0 0.0
    %290 = vmatpush1.msra.mxu0 0.0
    %291 = vmatprep.subr.mxu0 0.0
    %292 = vmatpush1.msra.mxu0 0.0
    %293 = vmatprep.subr.mxu0 0.0
    %294 = vmatpush1.msra.mxu0 0.0
    %295 = vmatprep.subr.mxu0 0.0
    %296 = vmatpush1.msra.mxu0 0.0
    %297 = vmatprep.subr.mxu0 0.0
    %298 = vmatpush1.msra.mxu0 0.0
    %299 = vmatprep.subr.mxu0 0.0
    %300 = vmatpush1.msra.mxu0 0.0
    %301 = vmatprep.subr.mxu0 0.0
    %302 = vmatpush1.msra.mxu0 0.0
    %303 = vmatprep.subr.mxu0 0.0
    %304 = vmatpush1.msra.mxu0 0.0
    %305 = vmatprep.mubr.f32.mxu0 0.0
    %306 = vmatmul.mubr.f32.gmra.mrb[0].mxu0 %v217
    %v307 = vpop.f32.mrb[0].mxu0
    %v308 = vadd.f32 %v239, %v307
    %v309 = vpop.f32.mrb[0].mxu0
    %310 = vdwg.mxu0
    %311 = vst [vmem:[#allocation8] sm:$0xf] %v308
    // Predicated region
    $region30: #{tpu_custom_call.1} parent=1 // pred_check
      _
    $region31: #{tpu_custom_call.1} parent=1 // pred_check_branch
      %313 = sbr.rel (0) target = $region33
    $region32: #{tpu_custom_call.1} parent=1 // pred_region
      %s315 = ssub.s32 64, 64
      %316 = vsyncadd [#allocation4], %s315
      %s318 = sshll.u32 [#allocation8], 4
      %s319 = int_to_ptr.vmem [resolvable:$true] %s318
      %321 = dma.vmem_to_hbm [thread:$0]  %s319, 64, %s4, [#allocation4]
    $region33: #{tpu_custom_call.1} parent=1 // pred_fallthru
      _
    // Predicated region
    $region34: #{tpu_custom_call.1} parent=1 // pred_check
      _
    $region35: #{tpu_custom_call.1} parent=1 // pred_check_branch
      %323 = sbr.rel (0) target = $region37
    $region36: #{tpu_custom_call.1} parent=1 // pred_region
      %324 = dma.done [#allocation4], 64
    $region37: #{tpu_custom_call.1} parent=1 // pred_fallthru
      _
    %325 = vsyncpa [#allocation3], 1
    %326 = vsyncpa [#allocation6], 1
    %327 = vsyncpa [#allocation4], 1

</llo_original>
